<compile_context>
chip_gen: v7x
topology: tpu7x:2x2x1
jax: 0.10.0
libtpu: 0.0.40
codegen_flags: <defaults>
</compile_context>

<pallas_src>
import jax
import jax.numpy as jnp
from jax.experimental import pallas as pl
from jax.experimental.pallas import tpu as pltpu

# Problem sizes (consistent with the module's constructor).
F = 4       # input_size (number of additive feature nets)
H1 = 32     # ActivationLayer 1 out_features
H2 = 32     # ActivationLayer 2 out_features == Linear.in_features


def nam_kernel(x_ref, b1_ref, w1_ref, b2_ref, w2_ref, wproj_ref, bias_ref,
               out_ref):
    """One batch tile of the fused NAM forward.

    x_ref:     (TB, F)            input tile (streamed over the grid)
    b1_ref:    (1, F)             ActivationLayer-1 biases (one per feature)
    w1_ref:    (F, F*H1)          block-diagonal layer-1 weights
    b2_ref:    (1, F*H1)          ActivationLayer-2 biases, flattened
    w2_ref:    (F*H1, F*H2)       block-diagonal layer-2 weights
    wproj_ref: (F*H2, F+1)        block-diag Wlin columns + final "sum" column
    bias_ref:  (1, 1) in SMEM     model-level scalar bias
    out_ref:   (TB, F+1)          [ f_out | f_out.sum(-1)+bias ]
    """
    # Layer 1: relu((x_i - b1_i) * w1_i) for all features at once.
    # One (TB,F)@(F,F*H1) block-diag matmul == F outer products, lane-dense.
    xc = x_ref[...] - b1_ref[...]                                   # (TB, F) VPU
    h1 = jnp.maximum(
        jnp.dot(xc, w1_ref[...], preferred_element_type=jnp.float32), 0.0)

    # Layer 2: relu((h1_i - b2_i) @ W2_i) fused into one 128x128 matmul.
    h2 = jnp.maximum(
        jnp.dot(h1 - b2_ref[...], w2_ref[...],
                preferred_element_type=jnp.float32), 0.0)           # (TB, F*H2)

    # Layer 3 + additive reduction: columns 0..F-1 give f_out, column F gives
    # sum_i f_i (the ones-fused "sum" column), all from a single matmul.
    out = jnp.dot(h2, wproj_ref[...],
                  preferred_element_type=jnp.float32)               # (TB, F+1)

    # Add the scalar model bias only to the sum column (column F).
    col = jax.lax.broadcasted_iota(jnp.int32, out.shape, dimension=1)
    out_ref[...] = out + (col == F).astype(jnp.float32) * bias_ref[0, 0]


def _pack_params(w1, b1, w2, b2, wlin):
    """Repack per-feature weights into block-diagonal fused operands (tiny)."""
    eye = jnp.eye(F, dtype=jnp.float32)
    # w1_blk[k, i*H1+j] = (k==i) * w1[i, 0, j]
    w1_blk = (eye[:, :, None] * w1[:, 0, :][None, :, :]).reshape(F, F * H1)
    # w2_blk[i*H1+a, k*H2+b] = (i==k) * w2[i, a, b]
    w2_blk = (eye[:, None, :, None] * w2[:, :, None, :]).reshape(F * H1, F * H2)
    # proj_blk[i*H2+a, k] = (i==k) * wlin[i, a, 0];  sum column = concat_i wlin_i
    proj_blk = (eye[:, None, :] * wlin[:, :, 0][:, :, None]).reshape(F * H2, F)
    sum_col = wlin[:, :, 0].reshape(F * H2, 1)
    wproj = jnp.concatenate([proj_blk, sum_col], axis=-1)           # (F*H2, F+1)
    b1_row = b1[:, 0].reshape(1, F)
    b2_row = b2.reshape(1, F * H1)
    return w1_blk, b1_row, w2_blk, b2_row, wproj


def nam_forward(x, w1, b1, w2, b2, wlin, bias, *, tile_b=512):
    """Wrapper: returns (out (B,), f_out (B, F)) like the PyTorch module."""
    B = x.shape[0]
    assert x.shape[1] == F

    w1_blk, b1_row, w2_blk, b2_row, wproj = _pack_params(w1, b1, w2, b2, wlin)
    bias_smem = bias.reshape(1, 1).astype(jnp.float32)

    # Batch tiling: second-to-last dim must be a multiple of 8; pad if needed.
    # (For v7x halve tile_b vs v6e if pushing very large tiles — weights are
    #  tiny, so the x / out tiles dominate VMEM.)
    tile_b = max(8, min(tile_b, pl.cdiv(B, 8) * 8))
    b_pad = pl.cdiv(B, tile_b) * tile_b
    x_p = jnp.pad(x, ((0, b_pad - B), (0, 0))) if b_pad != B else x
    grid = (b_pad // tile_b,)

    const = lambda i: (0, 0)   # weights: VMEM-resident across all batch tiles
    packed = pl.pallas_call(
        nam_kernel,
        out_shape=jax.ShapeDtypeStruct((b_pad, F + 1), jnp.float32),
        grid=grid,
        in_specs=[
            pl.BlockSpec((tile_b, F), lambda i: (i, 0)),        # x (streamed)
            pl.BlockSpec((1, F), const),                        # b1
            pl.BlockSpec((F, F * H1), const),                   # W1 block-diag
            pl.BlockSpec((1, F * H1), const),                   # b2
            pl.BlockSpec((F * H1, F * H2), const),              # W2 block-diag
            pl.BlockSpec((F * H2, F + 1), const),               # Wlin + sum col
            pl.BlockSpec(memory_space=pltpu.MemorySpace.SMEM),  # scalar bias
        ],
        out_specs=pl.BlockSpec((tile_b, F + 1), lambda i: (i, 0)),
        compiler_params=pltpu.CompilerParams(
            dimension_semantics=("parallel",)),
    )(x_p, b1_row, w1_blk, b2_row, w2_blk, wproj, bias_smem)

    packed = packed[:B]
    return packed[:, F], packed[:, :F]


def reference_forward(x, w1, b1, w2, b2, wlin, bias):
    """Pure-JAX reference mirroring the PyTorch forward (eval mode)."""
    cols = []
    for i in range(F):
        h = x[:, i:i + 1]
        h = jax.nn.relu((h - b1[i]) @ w1[i])
        h = jax.nn.relu((h - b2[i]) @ w2[i])
        cols.append(h @ wlin[i])
    f_out = jnp.concatenate(cols, axis=-1)
    return f_out.sum(axis=-1) + bias[0], f_out


def init_params(key):
    """Deterministic parameter init (shapes dictated by the module's __init__)."""
    ks = jax.random.split(key, 6)
    # ActivationLayer params: weight (in_features, out_features), bias (in_features,)
    w1 = jax.random.normal(ks[0], (F, 1, H1), jnp.float32) * 0.5
    b1 = jax.random.normal(ks[1], (F, 1), jnp.float32) * 0.5
    w2 = jax.random.normal(ks[2], (F, H1, H2), jnp.float32) * (1.0 / jnp.sqrt(H1))
    b2 = jax.random.normal(ks[3], (F, H1), jnp.float32) * 0.1
    # Linear(H2 -> 1, bias=False), xavier-uniform; stored transposed as (H2, 1)
    bound = jnp.sqrt(6.0 / (H2 + 1))
    wlin = jax.random.uniform(ks[4], (F, H2, 1), jnp.float32, -bound, bound)
    # MyNeuralAdditiveModel.bias = zeros(1)
    bias = jnp.zeros((1,), jnp.float32)
    return w1, b1, w2, b2, wlin, bias


if __name__ == "__main__":
    B = 16
    key = jax.random.PRNGKey(0)
    kx, kp = jax.random.split(key)
    x = jax.random.normal(kx, (B, F), jnp.float32)
    w1, b1, w2, b2, wlin, bias = init_params(kp)

    # tile_b=8 so the batch grid actually has >1 step at this toy size.
    sum_out, f_out = nam_forward(x, w1, b1, w2, b2, wlin, bias, tile_b=8)
    jax.block_until_ready((sum_out, f_out))

    ref_sum, ref_fout = reference_forward(x, w1, b1, w2, b2, wlin, bias)
    assert sum_out.shape == (B,) and f_out.shape == (B, F)
    assert jnp.allclose(f_out, ref_fout, atol=1e-4, rtol=1e-4), \
        float(jnp.abs(f_out - ref_fout).max())
    assert jnp.allclose(sum_out, ref_sum, atol=1e-4, rtol=1e-4), \
        float(jnp.abs(sum_out - ref_sum).max())

    print("KERNEL_OK")
</pallas_src>

<mosaic_0001>
module attributes {stable_mosaic.version = 11 : i64} {
  func.func @nam_kernel(%arg0: i32, %arg1: memref<8x4xf32, #tpu.memory_space<vmem>>, %arg2: memref<1x4xf32, #tpu.memory_space<vmem>>, %arg3: memref<4x128xf32, #tpu.memory_space<vmem>>, %arg4: memref<1x128xf32, #tpu.memory_space<vmem>>, %arg5: memref<128x128xf32, #tpu.memory_space<vmem>>, %arg6: memref<128x5xf32, #tpu.memory_space<vmem>>, %arg7: memref<1x1xf32, #tpu.memory_space<smem>>, %arg8: memref<8x5xf32, #tpu.memory_space<vmem>>) attributes {dimension_semantics = [#tpu.dimension_semantics<parallel>], iteration_bounds = array<i64: 2>, scalar_prefetch = 0 : i64, scratch_operands = 0 : i64, tpu.core_type = #tpu.core_type<tc>, window_params = [{transform_indices = @transform_0, window_bounds = array<i64: 8, 4>}, {pipeline_mode = #tpu.pipeline_mode<synchronous>, transform_indices = @transform_1, window_bounds = array<i64: 1, 4>}, {pipeline_mode = #tpu.pipeline_mode<synchronous>, transform_indices = @transform_2, window_bounds = array<i64: 4, 128>}, {pipeline_mode = #tpu.pipeline_mode<synchronous>, transform_indices = @transform_3, window_bounds = array<i64: 1, 128>}, {pipeline_mode = #tpu.pipeline_mode<synchronous>, transform_indices = @transform_4, window_bounds = array<i64: 128, 128>}, {pipeline_mode = #tpu.pipeline_mode<synchronous>, transform_indices = @transform_5, window_bounds = array<i64: 128, 5>}, {transform_indices = @transform_6, window_bounds = array<i64: 1, 1>}, {transform_indices = @transform_7, window_bounds = array<i64: 8, 5>}]} {
    %c0 = arith.constant 0 : index
    %c0_0 = arith.constant 0 : index
    %0 = vector.load %arg1[%c0, %c0_0] : memref<8x4xf32, #tpu.memory_space<vmem>>, vector<8x4xf32>
    %c0_1 = arith.constant 0 : index
    %c0_2 = arith.constant 0 : index
    %1 = vector.load %arg2[%c0_1, %c0_2] : memref<1x4xf32, #tpu.memory_space<vmem>>, vector<1x4xf32>
    %2 = vector.broadcast %1 : vector<1x4xf32> to vector<8x4xf32>
    %3 = arith.subf %0, %2 : vector<8x4xf32>
    %c0_3 = arith.constant 0 : index
    %c0_4 = arith.constant 0 : index
    %4 = vector.load %arg3[%c0_3, %c0_4] : memref<4x128xf32, #tpu.memory_space<vmem>>, vector<4x128xf32>
    %cst = arith.constant dense<0.000000e+00> : vector<8x128xf32>
    %5 = tpu.matmul %3, %4, %cst {dimension_numbers = #tpu.dot_dimension_numbers<[1], [0], [0], [1], [0, 0, 1, 1], [], []>} : vector<8x4xf32>, vector<4x128xf32>, vector<8x128xf32> -> vector<8x128xf32>
    %cst_5 = arith.constant 0.000000e+00 : f32
    %6 = vector.broadcast %cst_5 : f32 to vector<8x128xf32>
    %7 = arith.maximumf %5, %6 : vector<8x128xf32>
    %c0_6 = arith.constant 0 : index
    %c0_7 = arith.constant 0 : index
    %8 = vector.load %arg4[%c0_6, %c0_7] : memref<1x128xf32, #tpu.memory_space<vmem>>, vector<1x128xf32>
    %9 = vector.broadcast %8 : vector<1x128xf32> to vector<8x128xf32>
    %10 = arith.subf %7, %9 : vector<8x128xf32>
    %c0_8 = arith.constant 0 : index
    %c0_9 = arith.constant 0 : index
    %11 = vector.load %arg5[%c0_8, %c0_9] : memref<128x128xf32, #tpu.memory_space<vmem>>, vector<128x128xf32>
    %cst_10 = arith.constant dense<0.000000e+00> : vector<8x128xf32>
    %12 = tpu.matmul %10, %11, %cst_10 {dimension_numbers = #tpu.dot_dimension_numbers<[1], [0], [0], [1], [0, 0, 1, 1], [], []>} : vector<8x128xf32>, vector<128x128xf32>, vector<8x128xf32> -> vector<8x128xf32>
    %cst_11 = arith.constant 0.000000e+00 : f32
    %13 = vector.broadcast %cst_11 : f32 to vector<8x128xf32>
    %14 = arith.maximumf %12, %13 : vector<8x128xf32>
    %c0_12 = arith.constant 0 : index
    %c0_13 = arith.constant 0 : index
    %15 = vector.load %arg6[%c0_12, %c0_13] : memref<128x5xf32, #tpu.memory_space<vmem>>, vector<128x5xf32>
    %cst_14 = arith.constant dense<0.000000e+00> : vector<8x5xf32>
    %16 = tpu.matmul %14, %15, %cst_14 {dimension_numbers = #tpu.dot_dimension_numbers<[1], [0], [0], [1], [0, 0, 1, 1], [], []>} : vector<8x128xf32>, vector<128x5xf32>, vector<8x5xf32> -> vector<8x5xf32>
    %17 = tpu.iota {dimensions = array<i32: 1>} : vector<8x5xi32>
    %c4_i32 = arith.constant 4 : i32
    %18 = vector.broadcast %c4_i32 : i32 to vector<8x5xi32>
    %19 = arith.cmpi eq, %17, %18 : vector<8x5xi32>
    %20 = arith.extui %19 : vector<8x5xi1> to vector<8x5xi32>
    %21 = arith.sitofp %20 : vector<8x5xi32> to vector<8x5xf32>
    %c0_15 = arith.constant 0 : index
    %c0_16 = arith.constant 0 : index
    %22 = memref.load %arg7[%c0_15, %c0_16] : memref<1x1xf32, #tpu.memory_space<smem>>
    %23 = vector.broadcast %22 : f32 to vector<8x5xf32>
    %24 = arith.mulf %21, %23 : vector<8x5xf32>
    %25 = arith.addf %16, %24 : vector<8x5xf32>
    %c0_17 = arith.constant 0 : index
    %c0_18 = arith.constant 0 : index
    %26 = vector.load %arg8[%c0_17, %c0_18] : memref<8x5xf32, #tpu.memory_space<vmem>>, vector<8x5xf32>
    tpu.vector_store %arg8[%c0_17, %c0_18], %25 {strides = array<i32>} : memref<8x5xf32, #tpu.memory_space<vmem>>, vector<8x5xf32>,
    return
  }
  func.func @transform_0(%arg0: i32) -> (i32, i32) {
    %c0_i32 = arith.constant 0 : i32
    %c0_i32_0 = arith.constant 0 : i32
    return %arg0, %c0_i32 : i32, i32
  }
  func.func @transform_1(%arg0: i32) -> (i32, i32) {
    %c0_i32 = arith.constant 0 : i32
    %c0_i32_0 = arith.constant 0 : i32
    %c0_i32_1 = arith.constant 0 : i32
    return %c0_i32, %c0_i32_0 : i32, i32
  }
  func.func @transform_2(%arg0: i32) -> (i32, i32) {
    %c0_i32 = arith.constant 0 : i32
    %c0_i32_0 = arith.constant 0 : i32
    %c0_i32_1 = arith.constant 0 : i32
    return %c0_i32, %c0_i32_0 : i32, i32
  }
  func.func @transform_3(%arg0: i32) -> (i32, i32) {
    %c0_i32 = arith.constant 0 : i32
    %c0_i32_0 = arith.constant 0 : i32
    %c0_i32_1 = arith.constant 0 : i32
    return %c0_i32, %c0_i32_0 : i32, i32
  }
  func.func @transform_4(%arg0: i32) -> (i32, i32) {
    %c0_i32 = arith.constant 0 : i32
    %c0_i32_0 = arith.constant 0 : i32
    %c0_i32_1 = arith.constant 0 : i32
    return %c0_i32, %c0_i32_0 : i32, i32
  }
  func.func @transform_5(%arg0: i32) -> (i32, i32) {
    %c0_i32 = arith.constant 0 : i32
    %c0_i32_0 = arith.constant 0 : i32
    %c0_i32_1 = arith.constant 0 : i32
    return %c0_i32, %c0_i32_0 : i32, i32
  }
  func.func @transform_6(%arg0: i32) -> (i32, i32) {
    %c0_i32 = arith.constant 0 : i32
    %c0_i32_0 = arith.constant 0 : i32
    %c0_i32_1 = arith.constant 0 : i32
    return %c0_i32, %c0_i32_0 : i32, i32
  }
  func.func @transform_7(%arg0: i32) -> (i32, i32) {
    %c0_i32 = arith.constant 0 : i32
    %c0_i32_0 = arith.constant 0 : i32
    return %arg0, %c0_i32 : i32, i32
  }
}

</mosaic_0001>

<llo_original>
// kernel: tpu_custom_call.1
$region0: #{tpu_custom_call.1}
  #allocation0 [shape = 'u32[]', space=smem, size = 0x4, offset = 0x4, fixed_abs, tag = 'smem constant byte address 0x4 - core index']
  #allocation1 [shape = 'u32[144,128]{1,0:T(1,128)}', space=vmem, size = 0x12000, scoped, tag = 'internal scratch']
  #allocation2 [shape = 'f32[1,1]{1,0:T(1,128)S(6)}', space=smem, size = 0x200, scoped, tag = 'scoped memory for tpu_custom_call.1']
  %s0 = inlined_call_operand.vmem [shape: f32[16,4], index: 0, kind: input, shape index: {}]
  %s1 = inlined_call_operand.vmem [shape: f32[1,4], index: 1, kind: input, shape index: {}]
  %s2 = inlined_call_operand.vmem [shape: f32[4,128], index: 2, kind: input, shape index: {}]
  %s3 = inlined_call_operand.vmem [shape: f32[1,128], index: 3, kind: input, shape index: {}]
  %s4 = inlined_call_operand.vmem [shape: f32[128,128], index: 4, kind: input, shape index: {}]
  %s5 = inlined_call_operand.vmem [shape: f32[128,5], index: 5, kind: input, shape index: {}]
  %s6 = inlined_call_operand.<no memory space> [shape: f32[1,1], index: 6, kind: input, shape index: {}]
  %s7 = inlined_call_operand.vmem [shape: f32[16,5], index: 7, kind: output, shape index: {}]
  %s8 = sld [smem:[#allocation0]]
  $region61: #{tpu_custom_call.1} parent=0
    _
  %s10 = ssub.s32 1, %s8
  %s11 = scalar_select 0, %s10, %s8
  %12 = sst [smem:[#allocation2]] %s6
  loop: start=0, step=1, limit=4
  $region2: #{tpu_custom_call.1} parent=0 // loop_pre_header
    _
  $region3: #{tpu_custom_call.1} parent=0 // loop_header
    %s14 = sphi 0, %s18
    %p15 = scmp.ge.s32.totalorder %s14, 4
    %s24 = sphi 0, %s26
    %s27 = sphi 0, %s24
    %s28 = sphi 0, %s27
    %s44 = sphi 0, %s28
    %s48 = sphi 0, %s48
    %s50 = sphi 0, %s48
    %s51 = sphi 0, %s50
    %s65 = sphi 0, %s51
    %s69 = sphi 0, %s69
    %s71 = sphi 0, %s69
    %s72 = sphi 0, %s71
    %s86 = sphi 0, %s72
    %s90 = sphi 0, %s90
    %s92 = sphi 0, %s90
    %s93 = sphi 0, %s92
    %s107 = sphi 0, %s93
    %s111 = sphi 0, %s111
    %s113 = sphi 0, %s111
    %s114 = sphi 0, %s113
    %s128 = sphi 0, %s114
    %s132 = sphi 0, %s132
    %s134 = sphi 0, %s132
    %s135 = sphi 0, %s134
    %s149 = sphi 0, %s135
    %s153 = sphi 0, %s153
    %s155 = sphi 0, %s153
    %s156 = sphi 0, %s155
    %s170 = sphi 0, %s156
    %s176 = sphi 0, %s178
    %s179 = sphi 0, %s176
    %s180 = sphi 0, %s179
    %s196 = sphi 0, %s180
  $region4: #{tpu_custom_call.1} parent=0 // loop_header_branch
    %17 = sbr.rel (%p15) target = $region8
  $region5: #{tpu_custom_call.1} parent=0 // loop_body
    %s19 = ssub.s32 %s14, 1
    %s20 = ssub.s32 %s14, 2
    %s21 = sadd.s32 %s14, 1
    %s22 = ssub.s32 %s14, %s21
    %p23 = scmp.eq.s32.totalorder %s22, 0
    %s25 = sadd.s32 %s24, 1
    %s26 = scalar_select %p23, %s24, %s25
    %p29 = pneg %p23
    %p30 = scmp.eq.s32.totalorder %s14, 1
    %p31 = por %p29, %p30
    %p32 = scmp.ne.s32.totalorder %s24, %s27
    %p33 = scmp.eq.s32.totalorder %s14, 0
    %p34 = por %p32, %p33
    %p35 = scmp.ne.s32.totalorder %s24, %s27
    %p36 = scmp.eq.s32.totalorder %s19, 1
    %p37 = por %p35, %p36
    %p38 = scmp.ne.s32.totalorder %s27, %s28
    %p39 = scmp.eq.s32.totalorder %s19, 0
    %p40 = por %p38, %p39
    %p41 = scmp.ne.s32.totalorder %s27, %s28
    %p42 = scmp.eq.s32.totalorder %s20, 1
    %p43 = por %p41, %p42
    %p45 = scmp.ne.s32.totalorder %s28, %s44
    %p46 = scmp.eq.s32.totalorder %s20, 0
    %p47 = por %p45, %p46
    %s49 = sadd.s32 %s48, 1
    %p52 = scmp.eq.s32.totalorder %s14, 1
    %p53 = scmp.ne.s32.totalorder %s48, %s50
    %p54 = scmp.eq.s32.totalorder %s14, 0
    %p55 = por %p53, %p54
    %p56 = scmp.ne.s32.totalorder %s48, %s50
    %p57 = scmp.eq.s32.totalorder %s19, 1
    %p58 = por %p56, %p57
    %p59 = scmp.ne.s32.totalorder %s50, %s51
    %p60 = scmp.eq.s32.totalorder %s19, 0
    %p61 = por %p59, %p60
    %p62 = scmp.ne.s32.totalorder %s50, %s51
    %p63 = scmp.eq.s32.totalorder %s20, 1
    %p64 = por %p62, %p63
    %p66 = scmp.ne.s32.totalorder %s51, %s65
    %p67 = scmp.eq.s32.totalorder %s20, 0
    %p68 = por %p66, %p67
    %s70 = sadd.s32 %s69, 1
    %p73 = scmp.eq.s32.totalorder %s14, 1
    %p74 = scmp.ne.s32.totalorder %s69, %s71
    %p75 = scmp.eq.s32.totalorder %s14, 0
    %p76 = por %p74, %p75
    %p77 = scmp.ne.s32.totalorder %s69, %s71
    %p78 = scmp.eq.s32.totalorder %s19, 1
    %p79 = por %p77, %p78
    %p80 = scmp.ne.s32.totalorder %s71, %s72
    %p81 = scmp.eq.s32.totalorder %s19, 0
    %p82 = por %p80, %p81
    %p83 = scmp.ne.s32.totalorder %s71, %s72
    %p84 = scmp.eq.s32.totalorder %s20, 1
    %p85 = por %p83, %p84
    %p87 = scmp.ne.s32.totalorder %s72, %s86
    %p88 = scmp.eq.s32.totalorder %s20, 0
    %p89 = por %p87, %p88
    %s91 = sadd.s32 %s90, 1
    %p94 = scmp.eq.s32.totalorder %s14, 1
    %p95 = scmp.ne.s32.totalorder %s90, %s92
    %p96 = scmp.eq.s32.totalorder %s14, 0
    %p97 = por %p95, %p96
    %p98 = scmp.ne.s32.totalorder %s90, %s92
    %p99 = scmp.eq.s32.totalorder %s19, 1
    %p100 = por %p98, %p99
    %p101 = scmp.ne.s32.totalorder %s92, %s93
    %p102 = scmp.eq.s32.totalorder %s19, 0
    %p103 = por %p101, %p102
    %p104 = scmp.ne.s32.totalorder %s92, %s93
    %p105 = scmp.eq.s32.totalorder %s20, 1
    %p106 = por %p104, %p105
    %p108 = scmp.ne.s32.totalorder %s93, %s107
    %p109 = scmp.eq.s32.totalorder %s20, 0
    %p110 = por %p108, %p109
    %s112 = sadd.s32 %s111, 1
    %p115 = scmp.eq.s32.totalorder %s14, 1
    %p116 = scmp.ne.s32.totalorder %s111, %s113
    %p117 = scmp.eq.s32.totalorder %s14, 0
    %p118 = por %p116, %p117
    %p119 = scmp.ne.s32.totalorder %s111, %s113
    %p120 = scmp.eq.s32.totalorder %s19, 1
    %p121 = por %p119, %p120
    %p122 = scmp.ne.s32.totalorder %s113, %s114
    %p123 = scmp.eq.s32.totalorder %s19, 0
    %p124 = por %p122, %p123
    %p125 = scmp.ne.s32.totalorder %s113, %s114
    %p126 = scmp.eq.s32.totalorder %s20, 1
    %p127 = por %p125, %p126
    %p129 = scmp.ne.s32.totalorder %s114, %s128
    %p130 = scmp.eq.s32.totalorder %s20, 0
    %p131 = por %p129, %p130
    %s133 = sadd.s32 %s132, 1
    %p136 = scmp.eq.s32.totalorder %s14, 1
    %p137 = scmp.ne.s32.totalorder %s132, %s134
    %p138 = scmp.eq.s32.totalorder %s14, 0
    %p139 = por %p137, %p138
    %p140 = scmp.ne.s32.totalorder %s132, %s134
    %p141 = scmp.eq.s32.totalorder %s19, 1
    %p142 = por %p140, %p141
    %p143 = scmp.ne.s32.totalorder %s134, %s135
    %p144 = scmp.eq.s32.totalorder %s19, 0
    %p145 = por %p143, %p144
    %p146 = scmp.ne.s32.totalorder %s134, %s135
    %p147 = scmp.eq.s32.totalorder %s20, 1
    %p148 = por %p146, %p147
    %p150 = scmp.ne.s32.totalorder %s135, %s149
    %p151 = scmp.eq.s32.totalorder %s20, 0
    %p152 = por %p150, %p151
    %s154 = sadd.s32 %s153, 1
    %p157 = scmp.eq.s32.totalorder %s14, 1
    %p158 = scmp.ne.s32.totalorder %s153, %s155
    %p159 = scmp.eq.s32.totalorder %s14, 0
    %p160 = por %p158, %p159
    %p161 = scmp.ne.s32.totalorder %s153, %s155
    %p162 = scmp.eq.s32.totalorder %s19, 1
    %p163 = por %p161, %p162
    %p164 = scmp.ne.s32.totalorder %s155, %s156
    %p165 = scmp.eq.s32.totalorder %s19, 0
    %p166 = por %p164, %p165
    %p167 = scmp.ne.s32.totalorder %s155, %s156
    %p168 = scmp.eq.s32.totalorder %s20, 1
    %p169 = por %p167, %p168
    %p171 = scmp.ne.s32.totalorder %s156, %s170
    %p172 = scmp.eq.s32.totalorder %s20, 0
    %p173 = por %p171, %p172
    %s174 = ssub.s32 %s14, %s21
    %p175 = scmp.eq.s32.totalorder %s174, 0
    %s177 = sadd.s32 %s176, 1
    %s178 = scalar_select %p175, %s176, %s177
    %p181 = pneg %p175
    %p182 = scmp.eq.s32.totalorder %s14, 1
    %p183 = por %p181, %p182
    %p184 = scmp.ne.s32.totalorder %s176, %s179
    %p185 = scmp.eq.s32.totalorder %s14, 0
    %p186 = por %p184, %p185
    %p187 = scmp.ne.s32.totalorder %s176, %s179
    %p188 = scmp.eq.s32.totalorder %s19, 1
    %p189 = por %p187, %p188
    %p190 = scmp.ne.s32.totalorder %s179, %s180
    %p191 = scmp.eq.s32.totalorder %s19, 0
    %p192 = por %p190, %p191
    %p193 = scmp.ne.s32.totalorder %s179, %s180
    %p194 = scmp.eq.s32.totalorder %s20, 1
    %p195 = por %p193, %p194
    %p197 = scmp.ne.s32.totalorder %s180, %s196
    %p198 = scmp.eq.s32.totalorder %s20, 0
    %p199 = por %p197, %p198
    %p200 = scmp.le.s32.totalorder 1, %s14
    %p201 = scmp.lt.s32.totalorder %s14, 3
    %p202 = pnand %p200, %p201
    %p203 = pneg %p202
    // Predicated region
    $region9: #{tpu_custom_call.1} parent=5 // pred_check
      _
    $region10: #{tpu_custom_call.1} parent=5 // pred_check_branch
      %205 = sbr.rel (%p202) target = $region12
    $region11: #{tpu_custom_call.1} parent=5 // pred_region
      %s206 = ssub.s32 %s14, 1
      // Predicated region
      $region13: #{tpu_custom_call.1} parent=11 // pred_check
        %p207 = pneg %p61
      $region14: #{tpu_custom_call.1} parent=11 // pred_check_branch
        %209 = sbr.rel (%p207) target = $region16
      $region15: #{tpu_custom_call.1} parent=11 // pred_region
        _
      $region16: #{tpu_custom_call.1} parent=11 // pred_fallthru
        _
      // Predicated region
      $region17: #{tpu_custom_call.1} parent=11 // pred_check
        %p210 = pneg %p82
      $region18: #{tpu_custom_call.1} parent=11 // pred_check_branch
        %212 = sbr.rel (%p210) target = $region20
      $region19: #{tpu_custom_call.1} parent=11 // pred_region
        _
      $region20: #{tpu_custom_call.1} parent=11 // pred_fallthru
        _
      // Predicated region
      $region21: #{tpu_custom_call.1} parent=11 // pred_check
        %p213 = pneg %p103
      $region22: #{tpu_custom_call.1} parent=11 // pred_check_branch
        %215 = sbr.rel (%p213) target = $region24
      $region23: #{tpu_custom_call.1} parent=11 // pred_region
        _
      $region24: #{tpu_custom_call.1} parent=11 // pred_fallthru
        _
      // Predicated region
      $region25: #{tpu_custom_call.1} parent=11 // pred_check
        %p216 = pneg %p124
      $region26: #{tpu_custom_call.1} parent=11 // pred_check_branch
        %218 = sbr.rel (%p216) target = $region28
      $region27: #{tpu_custom_call.1} parent=11 // pred_region
        _
      $region28: #{tpu_custom_call.1} parent=11 // pred_fallthru
        _
      // Predicated region
      $region29: #{tpu_custom_call.1} parent=11 // pred_check
        %p219 = pneg %p145
      $region30: #{tpu_custom_call.1} parent=11 // pred_check_branch
        %221 = sbr.rel (%p219) target = $region32
      $region31: #{tpu_custom_call.1} parent=11 // pred_region
        _
      $region32: #{tpu_custom_call.1} parent=11 // pred_fallthru
        _
      // Predicated region
      $region33: #{tpu_custom_call.1} parent=11 // pred_check
        %p222 = pneg %p166
      $region34: #{tpu_custom_call.1} parent=11 // pred_check_branch
        %224 = sbr.rel (%p222) target = $region36
      $region35: #{tpu_custom_call.1} parent=11 // pred_region
        _
      $region36: #{tpu_custom_call.1} parent=11 // pred_fallthru
        _
    $region12: #{tpu_custom_call.1} parent=5 // pred_fallthru
      _
    %p225 = scmp.lt.s32.totalorder %s14, 2
    // Predicated region
    $region37: #{tpu_custom_call.1} parent=5 // pred_check
      %p226 = pneg %p225
    $region38: #{tpu_custom_call.1} parent=5 // pred_check_branch
      %228 = sbr.rel (%p226) target = $region40
    $region39: #{tpu_custom_call.1} parent=5 // pred_region
      // Predicated region
      $region41: #{tpu_custom_call.1} parent=39 // pred_check
        %p229 = pneg %p34
      $region42: #{tpu_custom_call.1} parent=39 // pred_check_branch
        %231 = sbr.rel (%p229) target = $region44
      $region43: #{tpu_custom_call.1} parent=39 // pred_region
        %p232 = scmp.lt.s32.totalorder %s14, 1
        %s233 = scalar_select %p232, %s14, 1
        %s234 = smul.addr %s233, 8
        %s235 = scalar_lea.vmem %s0, %s234
      $region44: #{tpu_custom_call.1} parent=39 // pred_fallthru
        _
    $region40: #{tpu_custom_call.1} parent=5 // pred_fallthru
      _
    %p236 = scmp.le.s32.totalorder 1, %s14
    %p237 = scmp.lt.s32.totalorder %s14, 3
    %p238 = pnand %p236, %p237
    %p239 = pneg %p238
    // Predicated region
    $region45: #{tpu_custom_call.1} parent=5 // pred_check
      _
    $region46: #{tpu_custom_call.1} parent=5 // pred_check_branch
      %241 = sbr.rel (%p238) target = $region48
    $region47: #{tpu_custom_call.1} parent=5 // pred_region
      %s242 = ssub.s32 %s14, 1
      %p243 = scmp.lt.s32.totalorder %s19, 1
      %s244 = scalar_select %p243, %s19, 1
      %s245 = smul.addr %s244, 8
      %s246 = scalar_lea.vmem %s0, %s245
      %p247 = pneg %p40
      %p248 = pneg %p37
      %p249 = pneg %p61
      %p250 = pneg %p58
      %p251 = pneg %p82
      %p252 = pneg %p79
      %p253 = pneg %p103
      %p254 = pneg %p100
      %p255 = pneg %p124
      %p256 = pneg %p121
      %p257 = pneg %p145
      %p258 = pneg %p142
      %p259 = pneg %p166
      %p260 = pneg %p163
      %p261 = pneg %p192
      %p262 = pneg %p189
      %p263 = scmp.lt.s32.totalorder %s19, 1
      %s264 = scalar_select %p263, %s19, 1
      %s265 = smul.addr %s264, 8
      %s266 = scalar_lea.vmem %s7, %s265
      %p267 = scmp.lt.s32.totalorder %s19, 1
      %s268 = scalar_select %p267, %s19, 1
      %s269 = smul.addr %s268, 8
      %s270 = scalar_lea.vmem %s0, %s269
      %p271 = scmp.lt.s32.totalorder %s19, 1
      %s272 = scalar_select %p271, %s19, 1
      %s273 = smul.addr %s272, 8
      %s274 = scalar_lea.vmem %s7, %s273
      %v275 = vld [vmem:[%s270] sm:$0xff]
      %v276 = vld [vmem:[%s1] sm:$0x1]
      %v278 = vlaneseq
      %v279 = vshrl.u32 %v278, 7
      %v280 = vsub.s32 0, %v279
      %v281 = vrot.slane %v276, %v280
      %v283 = vsub.f32 %v275, %v281
      %v284 = vld [vmem:[%s2] sm:$0xf]
      %vm285 = vcmask 31744
      %v287 = vsel %vm285, %v283, 0
      %vm289 = vcmask 1043456
      %v291 = vsel %vm289, %v284, 0
      %293 = vmatprep.subr.mxu0 0.0
      %294 = vmatpush1.msra.mxu0 %v291
      %295 = vmatprep.subr.mxu0 0.0
      %296 = vmatpush1.msra.mxu0 0.0
      %297 = vmatprep.subr.mxu0 0.0
      %298 = vmatpush1.msra.mxu0 0.0
      %299 = vmatprep.subr.mxu0 0.0
      %300 = vmatpush1.msra.mxu0 0.0
      %301 = vmatprep.subr.mxu0 0.0
      %302 = vmatpush1.msra.mxu0 0.0
      %303 = vmatprep.subr.mxu0 0.0
      %304 = vmatpush1.msra.mxu0 0.0
      %305 = vmatprep.subr.mxu0 0.0
      %306 = vmatpush1.msra.mxu0 0.0
      %307 = vmatprep.subr.mxu0 0.0
      %308 = vmatpush1.msra.mxu0 0.0
      %309 = vmatprep.subr.mxu0 0.0
      %310 = vmatpush1.msra.mxu0 0.0
      %311 = vmatprep.subr.mxu0 0.0
      %312 = vmatpush1.msra.mxu0 0.0
      %313 = vmatprep.subr.mxu0 0.0
      %314 = vmatpush1.msra.mxu0 0.0
      %315 = vmatprep.subr.mxu0 0.0
      %316 = vmatpush1.msra.mxu0 0.0
      %317 = vmatprep.subr.mxu0 0.0
      %318 = vmatpush1.msra.mxu0 0.0
      %319 = vmatprep.subr.mxu0 0.0
      %320 = vmatpush1.msra.mxu0 0.0
      %321 = vmatprep.subr.mxu0 0.0
      %322 = vmatpush1.msra.mxu0 0.0
      %323 = vmatprep.subr.mxu0 0.0
      %324 = vmatpush1.msra.mxu0 0.0
      %325 = vmatprep.subr.mxu0 0.0
      %326 = vmatpush1.msra.mxu0 0.0
      %327 = vmatprep.subr.mxu0 0.0
      %328 = vmatpush1.msra.mxu0 0.0
      %329 = vmatprep.subr.mxu0 0.0
      %330 = vmatpush1.msra.mxu0 0.0
      %331 = vmatprep.subr.mxu0 0.0
      %332 = vmatpush1.msra.mxu0 0.0
      %333 = vmatprep.subr.mxu0 0.0
      %334 = vmatpush1.msra.mxu0 0.0
      %335 = vmatprep.subr.mxu0 0.0
      %336 = vmatpush1.msra.mxu0 0.0
      %337 = vmatprep.subr.mxu0 0.0
      %338 = vmatpush1.msra.mxu0 0.0
      %339 = vmatprep.subr.mxu0 0.0
      %340 = vmatpush1.msra.mxu0 0.0
      %341 = vmatprep.subr.mxu0 0.0
      %342 = vmatpush1.msra.mxu0 0.0
      %343 = vmatprep.subr.mxu0 0.0
      %344 = vmatpush1.msra.mxu0 0.0
      %345 = vmatprep.subr.mxu0 0.0
      %346 = vmatpush1.msra.mxu0 0.0
      %347 = vmatprep.subr.mxu0 0.0
      %348 = vmatpush1.msra.mxu0 0.0
      %349 = vmatprep.subr.mxu0 0.0
      %350 = vmatpush1.msra.mxu0 0.0
      %351 = vmatprep.subr.mxu0 0.0
      %352 = vmatpush1.msra.mxu0 0.0
      %353 = vmatprep.subr.mxu0 0.0
      %354 = vmatpush1.msra.mxu0 0.0
      %355 = vmatprep.subr.mxu0 0.0
      %356 = vmatpush1.msra.mxu0 0.0
      %357 = vmatprep.mubr.f32.mxu0 0.0
      %358 = vmatmul.mubr.f32.gmra.mrb[0].mxu0 %v287
      %v359 = vpop.f32.mrb[0].mxu0
      %v360 = vadd.f32 0.0, %v359
      %v361 = vpop.f32.mrb[0].mxu0
      %362 = vdwg.mxu0
      %v363 = vmax.f32 %v360, 0.0
      %v364 = vld [vmem:[%s3] sm:$0x1]
      %v366 = vlaneseq
      %v367 = vshrl.u32 %v366, 7
      %v368 = vsub.s32 0, %v367
      %v369 = vrot.slane %v364, %v368
      %v371 = vsub.f32 %v363, %v369
      %v372 = vld [vmem:[%s4] sm:$0xff]
      %v373 = vld [vmem:[%s4 + $0x8] sm:$0xff]
      %v374 = vld [vmem:[%s4 + $0x10] sm:$0xff]
      %v375 = vld [vmem:[%s4 + $0x18] sm:$0xff]
      %v376 = vld [vmem:[%s4 + $0x20] sm:$0xff]
      %v377 = vld [vmem:[%s4 + $0x28] sm:$0xff]
      %v378 = vld [vmem:[%s4 + $0x30] sm:$0xff]
      %v379 = vld [vmem:[%s4 + $0x38] sm:$0xff]
      %v380 = vld [vmem:[%s4 + $0x40] sm:$0xff]
      %v381 = vld [vmem:[%s4 + $0x48] sm:$0xff]
      %v382 = vld [vmem:[%s4 + $0x50] sm:$0xff]
      %v383 = vld [vmem:[%s4 + $0x58] sm:$0xff]
      %v384 = vld [vmem:[%s4 + $0x60] sm:$0xff]
      %v385 = vld [vmem:[%s4 + $0x68] sm:$0xff]
      %v386 = vld [vmem:[%s4 + $0x70] sm:$0xff]
      %v387 = vld [vmem:[%s4 + $0x78] sm:$0xff]
      %388 = vmatprep.subr.mxu0 0.0
      %389 = vmatpush1.msra.mxu0 %v372
      %390 = vmatprep.subr.mxu0 0.0
      %391 = vmatpush1.msra.mxu0 %v373
      %392 = vmatprep.subr.mxu0 0.0
      %393 = vmatpush1.msra.mxu0 %v374
      %394 = vmatprep.subr.mxu0 0.0
      %395 = vmatpush1.msra.mxu0 %v375
      %396 = vmatprep.subr.mxu0 0.0
      %397 = vmatpush1.msra.mxu0 %v376
      %398 = vmatprep.subr.mxu0 0.0
      %399 = vmatpush1.msra.mxu0 %v377
      %400 = vmatprep.subr.mxu0 0.0
      %401 = vmatpush1.msra.mxu0 %v378
      %402 = vmatprep.subr.mxu0 0.0
      %403 = vmatpush1.msra.mxu0 %v379
      %404 = vmatprep.subr.mxu0 0.0
      %405 = vmatpush1.msra.mxu0 %v380
      %406 = vmatprep.subr.mxu0 0.0
      %407 = vmatpush1.msra.mxu0 %v381
      %408 = vmatprep.subr.mxu0 0.0
      %409 = vmatpush1.msra.mxu0 %v382
      %410 = vmatprep.subr.mxu0 0.0
      %411 = vmatpush1.msra.mxu0 %v383
      %412 = vmatprep.subr.mxu0 0.0
      %413 = vmatpush1.msra.mxu0 %v384
      %414 = vmatprep.subr.mxu0 0.0
      %415 = vmatpush1.msra.mxu0 %v385
      %416 = vmatprep.subr.mxu0 0.0
      %417 = vmatpush1.msra.mxu0 %v386
      %418 = vmatprep.subr.mxu0 0.0
      %419 = vmatpush1.msra.mxu0 %v387
      %420 = vmatprep.subr.mxu0 0.0
      %421 = vmatpush1.msra.mxu0 0.0
      %422 = vmatprep.subr.mxu0 0.0
      %423 = vmatpush1.msra.mxu0 0.0
      %424 = vmatprep.subr.mxu0 0.0
      %425 = vmatpush1.msra.mxu0 0.0
      %426 = vmatprep.subr.mxu0 0.0
      %427 = vmatpush1.msra.mxu0 0.0
      %428 = vmatprep.subr.mxu0 0.0
      %429 = vmatpush1.msra.mxu0 0.0
      %430 = vmatprep.subr.mxu0 0.0
      %431 = vmatpush1.msra.mxu0 0.0
      %432 = vmatprep.subr.mxu0 0.0
      %433 = vmatpush1.msra.mxu0 0.0
      %434 = vmatprep.subr.mxu0 0.0
      %435 = vmatpush1.msra.mxu0 0.0
      %436 = vmatprep.subr.mxu0 0.0
      %437 = vmatpush1.msra.mxu0 0.0
      %438 = vmatprep.subr.mxu0 0.0
      %439 = vmatpush1.msra.mxu0 0.0
      %440 = vmatprep.subr.mxu0 0.0
      %441 = vmatpush1.msra.mxu0 0.0
      %442 = vmatprep.subr.mxu0 0.0
      %443 = vmatpush1.msra.mxu0 0.0
      %444 = vmatprep.subr.mxu0 0.0
      %445 = vmatpush1.msra.mxu0 0.0
      %446 = vmatprep.subr.mxu0 0.0
      %447 = vmatpush1.msra.mxu0 0.0
      %448 = vmatprep.subr.mxu0 0.0
      %449 = vmatpush1.msra.mxu0 0.0
      %450 = vmatprep.subr.mxu0 0.0
      %451 = vmatpush1.msra.mxu0 0.0
      %452 = vmatprep.mubr.f32.mxu0 0.0
      %453 = vmatmul.mubr.f32.gmra.mrb[0].mxu0 %v371
      %v454 = vpop.f32.mrb[0].mxu0
      %v455 = vadd.f32 0.0, %v454
      %v456 = vpop.f32.mrb[0].mxu0
      %457 = vdwg.mxu0
      %v458 = vmax.f32 %v455, 0.0
      %v459 = vld [vmem:[%s5] sm:$0xff]
      %v460 = vld [vmem:[%s5 + $0x8] sm:$0xff]
      %v461 = vld [vmem:[%s5 + $0x10] sm:$0xff]
      %v462 = vld [vmem:[%s5 + $0x18] sm:$0xff]
      %v463 = vld [vmem:[%s5 + $0x20] sm:$0xff]
      %v464 = vld [vmem:[%s5 + $0x28] sm:$0xff]
      %v465 = vld [vmem:[%s5 + $0x30] sm:$0xff]
      %v466 = vld [vmem:[%s5 + $0x38] sm:$0xff]
      %v467 = vld [vmem:[%s5 + $0x40] sm:$0xff]
      %v468 = vld [vmem:[%s5 + $0x48] sm:$0xff]
      %v469 = vld [vmem:[%s5 + $0x50] sm:$0xff]
      %v470 = vld [vmem:[%s5 + $0x58] sm:$0xff]
      %v471 = vld [vmem:[%s5 + $0x60] sm:$0xff]
      %v472 = vld [vmem:[%s5 + $0x68] sm:$0xff]
      %v473 = vld [vmem:[%s5 + $0x70] sm:$0xff]
      %v474 = vld [vmem:[%s5 + $0x78] sm:$0xff]
      %v475 = vlaneseq
      %v476 = vand.u32 %v475, 127
      %vm477 = vcmp.eq.s32.totalorder %v476, 4
      %v478 = vsel %vm477, 1, 0
      %v479 = vcvt.s32.f32 %v478
      %s480 = sld [smem:[#allocation2]]
      %v481 = vstv %s480
      %v482 = vmul.f32 %v479, %v481
      %483 = vmatprep.subr.mxu0 0.0
      %484 = vmatpush1.msra.mxu0 %v459
      %485 = vmatprep.subr.mxu0 0.0
      %486 = vmatpush1.msra.mxu0 %v460
      %487 = vmatprep.subr.mxu0 0.0
      %488 = vmatpush1.msra.mxu0 %v461
      %489 = vmatprep.subr.mxu0 0.0
      %490 = vmatpush1.msra.mxu0 %v462
      %491 = vmatprep.subr.mxu0 0.0
      %492 = vmatpush1.msra.mxu0 %v463
      %493 = vmatprep.subr.mxu0 0.0
      %494 = vmatpush1.msra.mxu0 %v464
      %495 = vmatprep.subr.mxu0 0.0
      %496 = vmatpush1.msra.mxu0 %v465
      %497 = vmatprep.subr.mxu0 0.0
      %498 = vmatpush1.msra.mxu0 %v466
      %499 = vmatprep.subr.mxu0 0.0
      %500 = vmatpush1.msra.mxu0 %v467
      %501 = vmatprep.subr.mxu0 0.0
      %502 = vmatpush1.msra.mxu0 %v468
      %503 = vmatprep.subr.mxu0 0.0
      %504 = vmatpush1.msra.mxu0 %v469
      %505 = vmatprep.subr.mxu0 0.0
      %506 = vmatpush1.msra.mxu0 %v470
      %507 = vmatprep.subr.mxu0 0.0
      %508 = vmatpush1.msra.mxu0 %v471
      %509 = vmatprep.subr.mxu0 0.0
      %510 = vmatpush1.msra.mxu0 %v472
      %511 = vmatprep.subr.mxu0 0.0
      %512 = vmatpush1.msra.mxu0 %v473
      %513 = vmatprep.subr.mxu0 0.0
      %514 = vmatpush1.msra.mxu0 %v474
      %515 = vmatprep.subr.mxu0 0.0
      %516 = vmatpush1.msra.mxu0 0.0
      %517 = vmatprep.subr.mxu0 0.0
      %518 = vmatpush1.msra.mxu0 0.0
      %519 = vmatprep.subr.mxu0 0.0
      %520 = vmatpush1.msra.mxu0 0.0
      %521 = vmatprep.subr.mxu0 0.0
      %522 = vmatpush1.msra.mxu0 0.0
      %523 = vmatprep.subr.mxu0 0.0
      %524 = vmatpush1.msra.mxu0 0.0
      %525 = vmatprep.subr.mxu0 0.0
      %526 = vmatpush1.msra.mxu0 0.0
      %527 = vmatprep.subr.mxu0 0.0
      %528 = vmatpush1.msra.mxu0 0.0
      %529 = vmatprep.subr.mxu0 0.0
      %530 = vmatpush1.msra.mxu0 0.0
      %531 = vmatprep.subr.mxu0 0.0
      %532 = vmatpush1.msra.mxu0 0.0
      %533 = vmatprep.subr.mxu0 0.0
      %534 = vmatpush1.msra.mxu0 0.0
      %535 = vmatprep.subr.mxu0 0.0
      %536 = vmatpush1.msra.mxu0 0.0
      %537 = vmatprep.subr.mxu0 0.0
      %538 = vmatpush1.msra.mxu0 0.0
      %539 = vmatprep.subr.mxu0 0.0
      %540 = vmatpush1.msra.mxu0 0.0
      %541 = vmatprep.subr.mxu0 0.0
      %542 = vmatpush1.msra.mxu0 0.0
      %543 = vmatprep.subr.mxu0 0.0
      %544 = vmatpush1.msra.mxu0 0.0
      %545 = vmatprep.subr.mxu0 0.0
      %546 = vmatpush1.msra.mxu0 0.0
      %547 = vmatprep.mubr.f32.mxu0 0.0
      %548 = vmatmul.mubr.f32.gmra.mrb[0].mxu0 %v458
      %v549 = vpop.f32.mrb[0].mxu0
      %v550 = vadd.f32 %v482, %v549
      %v551 = vpop.f32.mrb[0].mxu0
      %552 = vdwg.mxu0
      %vm553 = vcmask 39936
      %554 = vst.msk [vmem:[%s274] sm:$0xff] %vm553, %v550
      %p555 = scmp.lt.s32.totalorder %s19, 1
      %s556 = scalar_select %p555, %s19, 1
      %s557 = smul.addr %s556, 8
      %s558 = scalar_lea.vmem %s7, %s557
      // Predicated region
      $region49: #{tpu_custom_call.1} parent=47 // pred_check
        %p559 = pneg %p189
      $region50: #{tpu_custom_call.1} parent=47 // pred_check_branch
        %561 = sbr.rel (%p559) target = $region52
      $region51: #{tpu_custom_call.1} parent=47 // pred_region
        _
      $region52: #{tpu_custom_call.1} parent=47 // pred_fallthru
        _
    $region48: #{tpu_custom_call.1} parent=5 // pred_fallthru
      _
    %p562 = scmp.le.s32.totalorder 2, %s14
    // Predicated region
    $region53: #{tpu_custom_call.1} parent=5 // pred_check
      %p563 = pneg %p562
    $region54: #{tpu_custom_call.1} parent=5 // pred_check_branch
      %565 = sbr.rel (%p563) target = $region56
    $region55: #{tpu_custom_call.1} parent=5 // pred_region
      %s566 = ssub.s32 %s14, 2
      // Predicated region
      $region57: #{tpu_custom_call.1} parent=55 // pred_check
        %p567 = pneg %p195
      $region58: #{tpu_custom_call.1} parent=55 // pred_check_branch
        %569 = sbr.rel (%p567) target = $region60
      $region59: #{tpu_custom_call.1} parent=55 // pred_region
        %p570 = scmp.lt.s32.totalorder %s20, 1
        %s571 = scalar_select %p570, %s20, 1
        %s572 = smul.addr %s571, 8
        %s573 = scalar_lea.vmem %s7, %s572
      $region60: #{tpu_custom_call.1} parent=55 // pred_fallthru
        _
    $region56: #{tpu_custom_call.1} parent=5 // pred_fallthru
      _
  $region6: #{tpu_custom_call.1} parent=0 // loop_footer
    %s18 = sadd.s32 1, %s14
  $region7: #{tpu_custom_call.1} parent=0 // loop_footer_branch
    %13 = sbr.rel target = $region3
  $region8: #{tpu_custom_call.1} parent=0 // loop_exit
    _

</llo_original>
